<compile_context>
chip_gen: v7x
topology: tpu7x:2x2x1
jax: 0.10.0
libtpu: 0.0.40
codegen_flags: <defaults>
</compile_context>

<pallas_src>
import functools
import math

import jax
import jax.numpy as jnp
from jax.experimental import pallas as pl
from jax.experimental.pallas import tpu as pltpu

LANE = 128
SUBLANE = 8
MAX_COLS = 2048                      # cap on the lane (last) dim of the slab
MAX_BLOCK_BYTES = 2 * 1024 * 1024    # ~2 MiB blocks amortize the ~0.35 us/step cost
MIN_SPLIT_BYTES = 256 * 1024         # never force multi-step with blocks below this
TARGET_GRID_STEPS = 8                # >= 8 steps shards across v7x's 2 TensorCores
DEFAULT_ADD_REQNT_FACTOR = 32


# ---------------------------------------------------------------------------
# Hardware-aware sizing
# ---------------------------------------------------------------------------
@functools.lru_cache(maxsize=None)
def _vmem_params():
    """(vmem_limit_bytes, double-buffered block budget) for this generation."""
    try:
        cap = int(pltpu.get_tpu_info().vmem_capacity_bytes)
    except Exception:
        cap = 64 * 1024 * 1024       # conservative: v7x per-TensorCore capacity
    vmem_limit = min(cap // 2, 64 * 1024 * 1024)   # 64 MiB on v5e/v6e, 32 MiB on v7x
    return vmem_limit, vmem_limit // 2             # leave headroom for compiler scratch


@functools.lru_cache(maxsize=None)
def _choose_cols(numel):
    """Largest divisor of numel usable as the lane (last) dim -> zero-copy reshape.

    Prefers multiples of 128 (unmasked stores) when numel is lane-aligned.
    Returns None when no divisor >= 128 exists (rare); caller pads instead.
    """
    limit = min(numel, MAX_COLS)
    if numel % LANE == 0:
        c = (limit // LANE) * LANE
        while c >= LANE:
            if numel % c == 0:
                return c
            c -= LANE
        return LANE
    for c in range(limit, LANE - 1, -1):
        if numel % c == 0:
            return c
    return None


def _pick_block_rows(rows, cols, n_arrays, vmem_budget):
    lane_cols = -(-cols // LANE) * LANE
    row_bytes = lane_cols * 4            # conservative: f32 footprint per row per array
    # Largest block that fits the double-buffered VMEM budget and the 2 MiB cap.
    budget_rows = max(SUBLANE, vmem_budget // (n_arrays * 2 * row_bytes))
    cap_rows = max(SUBLANE, MAX_BLOCK_BYTES // row_bytes)
    block_rows = min(rows, budget_rows, cap_rows)
    # Aim for >= TARGET_GRID_STEPS grid steps (megacore sharding on v7x, busy DMA
    # pipeline) but never shrink a block below ~MIN_SPLIT_BYTES.
    split_rows = max(MIN_SPLIT_BYTES // row_bytes, -(-rows // TARGET_GRID_STEPS))
    block_rows = min(block_rows, max(SUBLANE, split_rows))
    if block_rows < rows:
        block_rows = max(SUBLANE, (block_rows // SUBLANE) * SUBLANE)
    return block_rows


# ---------------------------------------------------------------------------
# Cached, jitted pallas_call builders (ratios / 1/D baked in as constants)
# ---------------------------------------------------------------------------
@functools.lru_cache(maxsize=None)
def _build_call(kind, ratios, inv_d, n_in, rows, cols, out_dtype_name):
    out_dtype = jnp.dtype(out_dtype_name)
    vmem_limit, vmem_budget = _vmem_params()
    block_rows = _pick_block_rows(rows, cols, n_in + 1, vmem_budget)
    grid = (pl.cdiv(rows, block_rows),)   # ragged last block handled by Pallas

    if kind == "requant":
        r = tuple(float(v) for v in ratios)
        s = float(inv_d)   # D is a power of two, so multiply by 1/D is exact

        def kernel(*refs):
            o_ref = refs[n_in]
            # Cast in-kernel: inputs are DMA'd in their source dtype (halves
            # bytes for bf16/int8 sources); VPU cast is free in a mem-bound op.
            acc = refs[0][...].astype(jnp.float32) * r[0]
            for i in range(1, n_in):
                acc = acc + refs[i][...].astype(jnp.float32) * r[i]
            o_ref[...] = jnp.floor(acc * s)
    else:  # plain sum (non-deployment / non-integerized branch)

        def kernel(*refs):
            o_ref = refs[n_in]
            acc = refs[0][...]
            for i in range(1, n_in):
                acc = acc + refs[i][...]
            o_ref[...] = acc.astype(o_ref.dtype)

    spec = pl.BlockSpec((block_rows, cols), lambda i: (i, 0))
    call = pl.pallas_call(
        kernel,
        out_shape=jax.ShapeDtypeStruct((rows, cols), out_dtype),
        grid=grid,
        in_specs=[spec] * n_in,
        out_specs=spec,
        compiler_params=pltpu.CompilerParams(
            dimension_semantics=("parallel",),
            vmem_limit_bytes=vmem_limit,
        ),
    )
    return jax.jit(call)   # cached compilation across repeated forward calls


# ---------------------------------------------------------------------------
# Glue: flatten to a lane-dense (rows, cols) view (no copy) and back
# ---------------------------------------------------------------------------
def _run_elementwise(kind, x_list, ratios=None, inv_d=None):
    shapes = {tuple(x.shape) for x in x_list}
    if len(shapes) != 1:
        raise ValueError(f"PACT_IntegerAdd: mismatched input shapes {shapes}")
    orig_shape = x_list[0].shape
    numel = int(math.prod(orig_shape))

    cols = _choose_cols(numel)
    padded = cols is None
    if padded:
        # TODO(synk): rare fallback (numel has no divisor >= 128, e.g. 2*prime);
        # the pad/slice adds one extra HBM pass per array.
        cols = LANE
        rows = -(-numel // LANE)
        slabs = [jnp.pad(x.reshape(-1), (0, rows * LANE - numel)).reshape(rows, LANE)
                 for x in x_list]
    else:
        rows = numel // cols
        slabs = [x.reshape(rows, cols) for x in x_list]   # pure views, zero-copy

    if kind == "requant":
        out_dtype = jnp.float32
    else:
        out_dtype = jnp.result_type(*[x.dtype for x in x_list])

    call = _build_call(kind, ratios, inv_d, len(x_list), rows, cols,
                       jnp.dtype(out_dtype).name)
    out = call(*slabs)

    if padded:
        out = out.reshape(-1)[:numel]
    return out.reshape(orig_shape)


# ---------------------------------------------------------------------------
# Module-equivalent wrapper
# ---------------------------------------------------------------------------
class PACT_IntegerAdd:
    """JAX/Pallas port of nemo.quant.pact.PACT_IntegerAdd (forward only)."""

    def __init__(self, alpha=1.0, bits=8,
                 requantization_factor=DEFAULT_ADD_REQNT_FACTOR):
        self.bits = bits
        self.requantization_factor = requantization_factor
        self.deployment = False
        self.integerized = False
        self.eps_in_list = []

    def get_output_eps(self, eps_in_list):
        if isinstance(eps_in_list, list):
            self.eps_in_list = eps_in_list
        self.eps_out = max(self.eps_in_list) * len(self.eps_in_list)
        self.alpha_out = 2.0 ** self.bits - 1
        self.D = 2.0 ** math.ceil(
            math.log2(self.requantization_factor * self.eps_out
                      / min(self.eps_in_list)))
        return self.eps_out

    def __call__(self, *x):
        x_list = list(x)
        if not self.deployment or not self.integerized:
            return _run_elementwise("sum", x_list)
        if not hasattr(self, "eps_out"):
            self.get_output_eps(self.eps_in_list)
        # r_i = round(D * eps_in_i / eps_out), baked into the kernel as
        # compile-time constants together with 1/D.
        # TODO(synk): f32 accumulation can lose exact integerness past 2^24,
        # matching the original float PyTorch implementation; an int32 in-kernel
        # path would be bit-exact if ever needed.
        ratios = tuple(float(round(self.D * e / self.eps_out))
                       for e in self.eps_in_list)
        return _run_elementwise("requant", x_list, ratios=ratios,
                                inv_d=1.0 / self.D)


# ---------------------------------------------------------------------------
# Test
# ---------------------------------------------------------------------------
if __name__ == "__main__":
    key = jax.random.PRNGKey(0)
    k0, k1, k2, k3 = jax.random.split(key, 4)

    # Integer-valued float tensors (NCHW), as produced by an integerized net.
    shape = (2, 4, 16, 16)
    x0 = jax.random.randint(k0, shape, 0, 256).astype(jnp.float32)
    x1 = jax.random.randint(k1, shape, 0, 256).astype(jnp.float32)

    module = PACT_IntegerAdd(bits=8, requantization_factor=32)
    module.deployment = True
    module.integerized = True
    module.get_output_eps([0.01, 0.02])

    y = jax.block_until_ready(module(x0, x1))

    # Pure-JAX reference for the requantized add.
    D = module.D
    eps_out = module.eps_out
    r0 = round(D * 0.01 / eps_out)
    r1 = round(D * 0.02 / eps_out)
    y_ref = jnp.floor((x0 * r0 + x1 * r1) / D)
    assert y.shape == shape and y.dtype == jnp.float32
    assert jnp.allclose(y, y_ref), "mismatch vs reference (integerized path)"

    # Second call hits the cached, jitted pallas callable (no retrace/recompile).
    y_again = jax.block_until_ready(module(x0, x1))
    assert jnp.allclose(y_again, y_ref), "mismatch on cached second call"

    # numel not a multiple of 128: zero-copy (2, 1200) slab, no pad/slice passes.
    shape2 = (2, 3, 20, 20)
    a0 = jax.random.randint(k2, shape2, 0, 256).astype(jnp.float32)
    a1 = jax.random.randint(k3, shape2, 0, 256).astype(jnp.float32)
    y2 = jax.block_until_ready(module(a0, a1))
    y2_ref = jnp.floor((a0 * r0 + a1 * r1) / D)
    assert y2.shape == shape2
    assert jnp.allclose(y2, y2_ref), "mismatch vs reference (non-aligned path)"

    # bf16 inputs: dtype cast happens inside the kernel (halves input DMA bytes).
    b0 = x0.astype(jnp.bfloat16)
    b1 = x1.astype(jnp.bfloat16)
    y3 = jax.block_until_ready(module(b0, b1))
    y3_ref = jnp.floor((b0.astype(jnp.float32) * r0
                        + b1.astype(jnp.float32) * r1) / D)
    assert jnp.allclose(y3, y3_ref), "mismatch vs reference (bf16 inputs)"

    # Plain-sum (non-deployment) branch.
    module2 = PACT_IntegerAdd()
    y_sum = jax.block_until_ready(module2(x0, x1))
    assert jnp.allclose(y_sum, x0 + x1), "mismatch vs reference (sum path)"

    print("KERNEL_OK")
</pallas_src>

<mosaic_0001>
module attributes {stable_mosaic.version = 11 : i64} {
  func.func @kernel(%arg0: i32, %arg1: memref<1x2048xf32, #tpu.memory_space<vmem>>, %arg2: memref<1x2048xf32, #tpu.memory_space<vmem>>, %arg3: memref<1x2048xf32, #tpu.memory_space<vmem>>) attributes {dimension_semantics = [#tpu.dimension_semantics<parallel>], iteration_bounds = array<i64: 1>, scalar_prefetch = 0 : i64, scratch_operands = 0 : i64, tpu.core_type = #tpu.core_type<tc>, window_params = [{transform_indices = @transform_0, window_bounds = array<i64: 1, 2048>}, {transform_indices = @transform_1, window_bounds = array<i64: 1, 2048>}, {transform_indices = @transform_2, window_bounds = array<i64: 1, 2048>}]} {
    %c0 = arith.constant 0 : index
    %c0_0 = arith.constant 0 : index
    %0 = vector.load %arg1[%c0, %c0_0] : memref<1x2048xf32, #tpu.memory_space<vmem>>, vector<1x2048xf32>
    %cst = arith.constant 3.200000e+01 : f32
    %1 = vector.broadcast %cst : f32 to vector<1x2048xf32>
    %2 = arith.mulf %0, %1 : vector<1x2048xf32>
    %c0_1 = arith.constant 0 : index
    %c0_2 = arith.constant 0 : index
    %3 = vector.load %arg2[%c0_1, %c0_2] : memref<1x2048xf32, #tpu.memory_space<vmem>>, vector<1x2048xf32>
    %cst_3 = arith.constant 6.400000e+01 : f32
    %4 = vector.broadcast %cst_3 : f32 to vector<1x2048xf32>
    %5 = arith.mulf %3, %4 : vector<1x2048xf32>
    %6 = arith.addf %2, %5 : vector<1x2048xf32>
    %cst_4 = arith.constant 7.812500e-03 : f32
    %7 = vector.broadcast %cst_4 : f32 to vector<1x2048xf32>
    %8 = arith.mulf %6, %7 : vector<1x2048xf32>
    %9 = math.floor %8 : vector<1x2048xf32>
    %c0_5 = arith.constant 0 : index
    %c0_6 = arith.constant 0 : index
    %10 = vector.load %arg3[%c0_5, %c0_6] : memref<1x2048xf32, #tpu.memory_space<vmem>>, vector<1x2048xf32>
    tpu.vector_store %arg3[%c0_5, %c0_6], %9 {strides = array<i32>} : memref<1x2048xf32, #tpu.memory_space<vmem>>, vector<1x2048xf32>,
    return
  }
  func.func @transform_0(%arg0: i32) -> (i32, i32) {
    %c0_i32 = arith.constant 0 : i32
    %c0_i32_0 = arith.constant 0 : i32
    return %arg0, %c0_i32 : i32, i32
  }
  func.func @transform_1(%arg0: i32) -> (i32, i32) {
    %c0_i32 = arith.constant 0 : i32
    %c0_i32_0 = arith.constant 0 : i32
    return %arg0, %c0_i32 : i32, i32
  }
  func.func @transform_2(%arg0: i32) -> (i32, i32) {
    %c0_i32 = arith.constant 0 : i32
    %c0_i32_0 = arith.constant 0 : i32
    return %arg0, %c0_i32 : i32, i32
  }
}

</mosaic_0001>

<llo_original>
// kernel: tpu_custom_call.1
$region0: #{tpu_custom_call.1}
  #allocation0 [shape = 'u32[]', space=smem, size = 0x4, offset = 0x4, fixed_abs, tag = 'smem constant byte address 0x4 - core index']
  #allocation1 [shape = 'u32[144,128]{1,0:T(1,128)}', space=vmem, size = 0x12000, scoped, tag = 'internal scratch']
  %s0 = inlined_call_operand.hbm [shape: f32[1,2048], index: 0, kind: input, shape index: {}]
  %s1 = inlined_call_operand.hbm [shape: f32[1,2048], index: 1, kind: input, shape index: {}]
  %s2 = inlined_call_operand.hbm [shape: f32[1,2048], index: 2, kind: output, shape index: {}]
  %s3 = sld [smem:[#allocation0]]
  $region26: #{tpu_custom_call.1} parent=0
    _
  %s5 = ssub.s32 1, %s3
  %s6 = scalar_select 0, %s5, %s3
  $region1: #{tpu_custom_call.1} parent=0
    #allocation2 [shape = 'u8[8192]{0}', space=vmem, size = 0x2000, scoped, tag = 'input window, operand 0, single buffered']
    #allocation3 [shape = 's32[1]{0}', space=sflag, size = 0x4, scoped, tag = 'scoped memory for tpu_custom_call.1']
    #allocation4 [shape = 's32[1]{0}', space=sflag, size = 0x4, scoped, tag = 'scoped memory for tpu_custom_call.1']
    #allocation5 [shape = 'u8[8192]{0}', space=vmem, size = 0x2000, scoped, tag = 'input window, operand 1, single buffered']
    #allocation6 [shape = 's32[1]{0}', space=sflag, size = 0x4, scoped, tag = 'scoped memory for tpu_custom_call.1']
    #allocation7 [shape = 'u8[8192]{0}', space=vmem, size = 0x2000, scoped, tag = 'output window, operand 0, single buffered']
    %7 = vsyncpa [#allocation3], 0
    %8 = vsyncpa [#allocation6], 0
    %9 = vsyncpa [#allocation4], 0
    // Predicated region
    $region2: #{tpu_custom_call.1} parent=1 // pred_check
      _
    $region3: #{tpu_custom_call.1} parent=1 // pred_check_branch
      %11 = sbr.rel (0) target = $region5
    $region4: #{tpu_custom_call.1} parent=1 // pred_region
      %s13 = ssub.s32 256, 256
      %14 = vsyncadd [#allocation3], %s13
      %s16 = sshll.u32 [#allocation2], 4
      %s17 = int_to_ptr.vmem [resolvable:$true] %s16
      %19 = dma.hbm_to_vmem [thread:$0]  %s0, 256, %s17, [#allocation3]
    $region5: #{tpu_custom_call.1} parent=1 // pred_fallthru
      _
    // Predicated region
    $region6: #{tpu_custom_call.1} parent=1 // pred_check
      _
    $region7: #{tpu_custom_call.1} parent=1 // pred_check_branch
      %21 = sbr.rel (0) target = $region9
    $region8: #{tpu_custom_call.1} parent=1 // pred_region
      %s23 = ssub.s32 256, 256
      %24 = vsyncadd [#allocation6], %s23
      %s26 = sshll.u32 [#allocation5], 4
      %s27 = int_to_ptr.vmem [resolvable:$true] %s26
      %29 = dma.hbm_to_vmem [thread:$0]  %s1, 256, %s27, [#allocation6]
    $region9: #{tpu_custom_call.1} parent=1 // pred_fallthru
      _
    // Predicated region
    $region10: #{tpu_custom_call.1} parent=1 // pred_check
      _
    $region11: #{tpu_custom_call.1} parent=1 // pred_check_branch
      %31 = sbr.rel (0) target = $region13
    $region12: #{tpu_custom_call.1} parent=1 // pred_region
      %32 = dma.done [#allocation3], 256
    $region13: #{tpu_custom_call.1} parent=1 // pred_fallthru
      _
    // Predicated region
    $region14: #{tpu_custom_call.1} parent=1 // pred_check
      _
    $region15: #{tpu_custom_call.1} parent=1 // pred_check_branch
      %34 = sbr.rel (0) target = $region17
    $region16: #{tpu_custom_call.1} parent=1 // pred_region
      %35 = dma.done [#allocation6], 256
    $region17: #{tpu_custom_call.1} parent=1 // pred_fallthru
      _
    %v36 = vld [vmem:[#allocation2] sm:$0xff]
    %v37 = vld [vmem:[#allocation2 + $0x8] sm:$0xff]
    %v38 = vmul.f32 %v36, 32.0
    %v39 = vmul.f32 %v37, 32.0
    %v40 = vld [vmem:[#allocation5] sm:$0xff]
    %v41 = vld [vmem:[#allocation5 + $0x8] sm:$0xff]
    %v42 = vmul.f32 %v40, 64.0
    %v43 = vmul.f32 %v41, 64.0
    %v44 = vadd.f32 %v38, %v42
    %v45 = vadd.f32 %v39, %v43
    %v46 = vmul.f32 %v44, 0.0078125
    %v47 = vmul.f32 %v45, 0.0078125
    %v48 = vfloor.f32 %v46
    %v49 = vfloor.f32 %v47
    %50 = vst [vmem:[#allocation7] sm:$0xff] %v48
    %51 = vst [vmem:[#allocation7 + $0x8] sm:$0xff] %v49
    // Predicated region
    $region18: #{tpu_custom_call.1} parent=1 // pred_check
      _
    $region19: #{tpu_custom_call.1} parent=1 // pred_check_branch
      %53 = sbr.rel (0) target = $region21
    $region20: #{tpu_custom_call.1} parent=1 // pred_region
      %s55 = ssub.s32 256, 256
      %56 = vsyncadd [#allocation4], %s55
      %s58 = sshll.u32 [#allocation7], 4
      %s59 = int_to_ptr.vmem [resolvable:$true] %s58
      %61 = dma.vmem_to_hbm [thread:$0]  %s59, 256, %s2, [#allocation4]
    $region21: #{tpu_custom_call.1} parent=1 // pred_fallthru
      _
    // Predicated region
    $region22: #{tpu_custom_call.1} parent=1 // pred_check
      _
    $region23: #{tpu_custom_call.1} parent=1 // pred_check_branch
      %63 = sbr.rel (0) target = $region25
    $region24: #{tpu_custom_call.1} parent=1 // pred_region
      %64 = dma.done [#allocation4], 256
    $region25: #{tpu_custom_call.1} parent=1 // pred_fallthru
      _
    %65 = vsyncpa [#allocation3], 1
    %66 = vsyncpa [#allocation6], 1
    %67 = vsyncpa [#allocation4], 1

</llo_original>
